<compile_context>
chip_gen: v5e
topology: v5e:2x2
jax: 0.10.0
libtpu: 0.0.40
codegen_flags: <defaults>
</compile_context>

<pallas_src>
import math

import jax
import jax.numpy as jnp
from jax.experimental import pallas as pl
from jax.experimental.pallas import tpu as pltpu


_LANE = 128

# Per-grid-step byte budget summed over all operands (inputs + output).
# Double buffering doubles the VMEM footprint:
#   v5e : 6 MiB/step  -> 12 MiB  (< 16 MiB default scoped VMEM)
#   v6e : 12 MiB/step -> 24 MiB  (< 32 MiB default scoped VMEM)
#   v7x : 12 MiB/step -> 24 MiB  (< 32 MiB default; 48 MiB limit set for
#          headroom, still well under the 64 MiB physical per-TC VMEM)
_TARGET_STEP_BYTES = {"v5e": 6 << 20, "v6e": 12 << 20, "v7x": 12 << 20,
                      "unknown": 6 << 20}
_VMEM_LIMIT_BYTES = {"v5e": None, "v6e": None, "v7x": 48 << 20, "unknown": None}


def _chip_generation():
    try:
        kind = jax.devices()[0].device_kind.lower()
    except Exception:
        return "unknown"
    if "v7" in kind:
        return "v7x"
    if "v6" in kind:
        return "v6e"
    if "v5" in kind:
        return "v5e"
    return "unknown"


def _pick_lanes(n):
    """Largest of {1024, 512, 256, 128} dividing n (n must be a multiple of 128)."""
    for cand in (1024, 512, 256, _LANE):
        if n % cand == 0:
            return cand
    return _LANE


def _row_tile(rows, lanes, step_itemsize, target_step_bytes):
    """Rows per block so one grid step moves ~target_step_bytes across operands."""
    tr = max(1, target_step_bytes // (lanes * step_itemsize))
    if tr >= rows:
        return rows                      # full height (full-dim block is legal)
    return max(8, (tr // 8) * 8)         # multiple of 8; ragged last block is OK


# ---------------------------------------------------------------------------
# Kernels
# ---------------------------------------------------------------------------
def _residual_add_kernel(y_ref, x_ref, o_ref):
    # o = fn(x) + x, with y = fn(x) precomputed outside the kernel.
    o_ref[...] = (y_ref[...] + x_ref[...]).astype(o_ref.dtype)


def _make_fused_residual_kernel(fn, compute_dtype):
    # o = fn(x) + x computed block-wise in a single pass (elementwise fn only).
    def kernel(x_ref, o_ref):
        xc = x_ref[...].astype(compute_dtype)
        o_ref[...] = (fn(xc) + xc).astype(o_ref.dtype)
    return kernel


# ---------------------------------------------------------------------------
# pallas_call wrapper for lane-dense elementwise slabs
# ---------------------------------------------------------------------------
def _elementwise_call(kernel, out_dtype, operands_2d, *, alias_first_to_output=False):
    rows, lanes = operands_2d[0].shape
    step_itemsize = sum(jnp.dtype(op.dtype).itemsize for op in operands_2d)
    step_itemsize += jnp.dtype(out_dtype).itemsize
    gen = _chip_generation()
    tile_rows = _row_tile(rows, lanes, step_itemsize, _TARGET_STEP_BYTES[gen])
    grid = (pl.cdiv(rows, tile_rows),)
    spec = pl.BlockSpec((tile_rows, lanes), lambda i: (i, 0))

    kwargs = {}
    if (alias_first_to_output
            and jnp.dtype(operands_2d[0].dtype) == jnp.dtype(out_dtype)):
        # Logically an in-place add: alias y to the output so no second
        # full-size HBM result buffer is allocated (footprint only).
        kwargs["input_output_aliases"] = {0: 0}

    # TODO(synk): on v7x, confirm in the trace that the single "parallel" axis
    # shards rows across both TensorCores; if not, switch to CORE_PARALLEL /
    # pl.core_map.  pipeline_mode=pl.Buffered(3) is a cheap follow-up sweep if
    # per-step DMA setup is still exposed at 3.2 TB/s.
    return pl.pallas_call(
        kernel,
        out_shape=jax.ShapeDtypeStruct((rows, lanes), out_dtype),
        grid_spec=pltpu.PrefetchScalarGridSpec(
            num_scalar_prefetch=0,
            grid=grid,
            in_specs=[spec] * len(operands_2d),
            out_specs=spec,
        ),
        compiler_params=pltpu.CompilerParams(
            dimension_semantics=("parallel",),
            vmem_limit_bytes=_VMEM_LIMIT_BYTES[gen],
        ),
        **kwargs,
    )(*operands_2d)


# ---------------------------------------------------------------------------
# Residual paths
# ---------------------------------------------------------------------------
def _pallas_add(y, x, out_dtype):
    """Elementwise y + x via Pallas (aligned prefix) + jnp (<128-element tail)."""
    total = math.prod(y.shape) if y.ndim > 0 else 1
    yf = y.reshape(total)
    xf = x.reshape(total)
    main = (total // _LANE) * _LANE
    if main == 0:
        # Tiny array: a Pallas launch is pure overhead here.
        return (yf + xf).astype(out_dtype).reshape(y.shape)
    lanes = _pick_lanes(main)
    rows = main // lanes
    out2d = _elementwise_call(
        _residual_add_kernel, out_dtype,
        (yf[:main].reshape(rows, lanes), xf[:main].reshape(rows, lanes)),
        alias_first_to_output=True)
    out_main = out2d.reshape(main)
    if main == total:
        return out_main.reshape(y.shape)
    # Rare non-128-aligned case: tail (<128 elems) in jnp; the concat copies
    # once, which is still far cheaper than the old full-array pad + slice.
    tail = (yf[main:] + xf[main:]).astype(out_dtype)
    return jnp.concatenate([out_main, tail]).reshape(y.shape)


def _pallas_fused(fn, x, compute_dtype, out_dtype):
    """(fn(x) + x) with fn fused into the kernel — single HBM read + write."""
    total = math.prod(x.shape) if x.ndim > 0 else 1
    xf = x.reshape(total)
    main = (total // _LANE) * _LANE
    if main == 0:
        xc = xf.astype(compute_dtype)
        return (fn(xc) + xc).astype(out_dtype).reshape(x.shape)
    lanes = _pick_lanes(main)
    rows = main // lanes
    out2d = _elementwise_call(
        _make_fused_residual_kernel(fn, compute_dtype), out_dtype,
        (xf[:main].reshape(rows, lanes),))
    out_main = out2d.reshape(main)
    if main == total:
        return out_main.reshape(x.shape)
    xc_tail = xf[main:].astype(compute_dtype)
    tail = (fn(xc_tail) + xc_tail).astype(out_dtype)
    return jnp.concatenate([out_main, tail]).reshape(x.shape)


def residual(fn, x, *, fuse_elementwise=False, compute_dtype=None):
    """Pallas forward of `Residual`: returns fn(x) + x.

    fuse_elementwise=True fuses `fn` into the kernel (valid only when `fn` is
    a purely elementwise, jnp-traceable function over the flattened array).
    Otherwise `fn` runs as ordinary JAX and only the residual add is Pallas.
    """
    if fuse_elementwise:
        if compute_dtype is None:
            gen = _chip_generation()
            if x.dtype == jnp.bfloat16 and gen in ("v6e", "v7x"):
                compute_dtype = jnp.bfloat16      # native bf16 VPU/EUP
            elif jnp.issubdtype(x.dtype, jnp.floating):
                compute_dtype = jnp.promote_types(x.dtype, jnp.float32)
            else:
                compute_dtype = jnp.float32
        y_aval = jax.eval_shape(fn, jax.ShapeDtypeStruct(x.shape, compute_dtype))
        assert y_aval.shape == x.shape, \
            "fuse_elementwise=True requires an elementwise (shape-preserving) fn"
        out_dtype = jnp.result_type(y_aval.dtype, x.dtype)
        return _pallas_fused(fn, x, compute_dtype, out_dtype)

    # TODO(synk): with an arbitrary fn (attention / FFN / PreNorm in mmformer),
    # fn runs as plain JAX and y must be materialized in HBM, so the standalone
    # Pallas add costs ~4N bytes of post-fn traffic vs ~2N if the '+ x' were
    # fused into fn's epilogue — use fuse_elementwise=True whenever fn allows.
    y = fn(x)
    assert y.shape == x.shape, "Residual requires fn(x).shape == x.shape"
    out_dtype = jnp.result_type(y.dtype, x.dtype)
    return _pallas_add(y, x, out_dtype)


if __name__ == "__main__":
    key = jax.random.PRNGKey(0)
    k1, k2, k3 = jax.random.split(key, 3)

    # Small NCHW-style input (conv feature maps), as used inside mmformer.
    x = jax.random.normal(k1, (2, 4, 16, 16), dtype=jnp.float32)

    # Path 1: elementwise fn fused into the kernel (single HBM read + write).
    fn_ew = jax.nn.gelu
    fused_call = jax.jit(lambda t: residual(fn_ew, t, fuse_elementwise=True))
    y_fused = jax.block_until_ready(fused_call(x))
    ref_fused = fn_ew(x) + x
    assert y_fused.shape == x.shape and y_fused.dtype == x.dtype
    assert jnp.allclose(y_fused, ref_fused, atol=1e-5, rtol=1e-5)

    # Path 2: arbitrary (non-elementwise) fn runs in JAX; residual add in Pallas.
    w = jax.random.normal(k2, (16, 16), dtype=jnp.float32) * 0.1
    fn_mix = lambda t: jnp.einsum("nchw,wk->nchk", t, w)
    gen_call = jax.jit(lambda t: residual(fn_mix, t))
    y_gen = jax.block_until_ready(gen_call(x))
    ref_gen = fn_mix(x) + x
    assert y_gen.shape == x.shape
    assert jnp.allclose(y_gen, ref_gen, atol=1e-5, rtol=1e-5)

    # Path 3: non-128-aligned element count exercises the aligned-prefix +
    # jnp-tail path (no full-array pad / slice copies).
    x3 = jax.random.normal(k3, (7, 130), dtype=jnp.float32)
    tail_call = jax.jit(lambda t: residual(jnp.tanh, t))
    y3 = jax.block_until_ready(tail_call(x3))
    ref3 = jnp.tanh(x3) + x3
    assert y3.shape == x3.shape
    assert jnp.allclose(y3, ref3, atol=1e-5, rtol=1e-5)

    print("KERNEL_OK")
</pallas_src>

<mosaic_0001>
module attributes {stable_mosaic.version = 11 : i64} {
  func.func @kernel(%arg0: i32, %arg1: memref<2x1024xf32, #tpu.memory_space<vmem>>, %arg2: memref<2x1024xf32, #tpu.memory_space<vmem>>) attributes {dimension_semantics = [#tpu.dimension_semantics<parallel>], iteration_bounds = array<i64: 1>, scalar_prefetch = 0 : i64, scratch_operands = 0 : i64, tpu.core_type = #tpu.core_type<tc>, window_params = [{transform_indices = @transform_0, window_bounds = array<i64: 2, 1024>}, {transform_indices = @transform_1, window_bounds = array<i64: 2, 1024>}]} {
    %c0 = arith.constant 0 : index
    %c0_0 = arith.constant 0 : index
    %0 = vector.load %arg1[%c0, %c0_0] : memref<2x1024xf32, #tpu.memory_space<vmem>>, vector<2x1024xf32>
    %1 = arith.mulf %0, %0 : vector<2x1024xf32>
    %2 = arith.mulf %0, %1 : vector<2x1024xf32>
    %cst = arith.constant 4.471500e-02 : f32
    %3 = vector.broadcast %cst : f32 to vector<2x1024xf32>
    %4 = arith.mulf %3, %2 : vector<2x1024xf32>
    %5 = arith.addf %0, %4 : vector<2x1024xf32>
    %cst_1 = arith.constant 0.797884583 : f32
    %6 = vector.broadcast %cst_1 : f32 to vector<2x1024xf32>
    %7 = arith.mulf %6, %5 : vector<2x1024xf32>
    %8 = math.tanh %7 : vector<2x1024xf32>
    %cst_2 = arith.constant 1.000000e+00 : f32
    %9 = vector.broadcast %cst_2 : f32 to vector<2x1024xf32>
    %10 = arith.addf %9, %8 : vector<2x1024xf32>
    %cst_3 = arith.constant 5.000000e-01 : f32
    %11 = vector.broadcast %cst_3 : f32 to vector<2x1024xf32>
    %12 = arith.mulf %11, %10 : vector<2x1024xf32>
    %13 = arith.mulf %0, %12 : vector<2x1024xf32>
    %14 = arith.addf %13, %0 : vector<2x1024xf32>
    %c0_4 = arith.constant 0 : index
    %c0_5 = arith.constant 0 : index
    %15 = vector.load %arg2[%c0_4, %c0_5] : memref<2x1024xf32, #tpu.memory_space<vmem>>, vector<2x1024xf32>
    tpu.vector_store %arg2[%c0_4, %c0_5], %14 {strides = array<i32>} : memref<2x1024xf32, #tpu.memory_space<vmem>>, vector<2x1024xf32>,
    return
  }
  func.func @transform_0(%arg0: i32) -> (i32, i32) {
    %c0_i32 = arith.constant 0 : i32
    %c0_i32_0 = arith.constant 0 : i32
    return %arg0, %c0_i32 : i32, i32
  }
  func.func @transform_1(%arg0: i32) -> (i32, i32) {
    %c0_i32 = arith.constant 0 : i32
    %c0_i32_0 = arith.constant 0 : i32
    return %arg0, %c0_i32 : i32, i32
  }
}

</mosaic_0001>

<llo_original>
// kernel: _lambda_.1
$region0: #{_lambda_.1}
  #allocation0 [shape = 'u32[]', space=smem, size = 0x4, offset = 0x4, fixed_abs, tag = 'smem constant byte address 0x4 - core index']
  #allocation1 [shape = 'u32[72,128]{1,0:T(1,128)}', space=vmem, size = 0x9000, scoped, tag = 'internal scratch']
  %s0 = inlined_call_operand.vmem [shape: f32[2,1024], index: 0, kind: input, shape index: {}]
  %s1 = inlined_call_operand.vmem [shape: f32[2,1024], index: 1, kind: output, shape index: {}]
  %s2 = sld [smem:[#allocation0]]
  $region14: #{_lambda_.1} parent=0
    _
  %s4 = ssub.s32 1, %s2
  %s5 = scalar_select 0, %s4, %s2
  // Predicated region
  $region2: #{_lambda_.1} parent=0 // pred_check
    _
  $region3: #{_lambda_.1} parent=0 // pred_check_branch
    %7 = sbr.rel (0) target = $region5
  $region4: #{_lambda_.1} parent=0 // pred_region
    _
  $region5: #{_lambda_.1} parent=0 // pred_fallthru
    _
  %v8 = vld [vmem:[%s0] sm:$0xff]
  %v9 = vld [vmem:[%s0 + $0x8] sm:$0xff]
  %v10 = vmul.f32 %v8, %v8
  %v11 = vmul.f32 %v9, %v9
  %v12 = vmul.f32 %v8, %v10
  %v13 = vmul.f32 %v9, %v11
  %v14 = vmul.f32 %v12, 0.044715
  %v15 = vmul.f32 %v13, 0.044715
  %v16 = vadd.f32 %v8, %v14
  %v17 = vadd.f32 %v9, %v15
  %v18 = vmul.f32 %v16, 0.7978846
  %v19 = vmul.f32 %v17, 0.7978846
  %v20 = vtanh.pop %v18
  %v21 = vtanh.pop %v19
  %v22 = vadd.f32 %v20, 1.0
  %v23 = vadd.f32 %v21, 1.0
  %v24 = vmul.f32 %v22, 0.5
  %v25 = vmul.f32 %v23, 0.5
  %v26 = vmul.f32 %v8, %v24
  %v27 = vmul.f32 %v9, %v25
  %v28 = vadd.f32 %v26, %v8
  %v29 = vadd.f32 %v27, %v9
  %30 = vst [vmem:[%s1] sm:$0xff] %v28
  %31 = vst [vmem:[%s1 + $0x8] sm:$0xff] %v29
  // Predicated region
  $region6: #{_lambda_.1} parent=0 // pred_check
    _
  $region7: #{_lambda_.1} parent=0 // pred_check_branch
    %33 = sbr.rel (0) target = $region9
  $region8: #{_lambda_.1} parent=0 // pred_region
    _
  $region9: #{_lambda_.1} parent=0 // pred_fallthru
    _
  // Predicated region
  $region10: #{_lambda_.1} parent=0 // pred_check
    _
  $region11: #{_lambda_.1} parent=0 // pred_check_branch
    %35 = sbr.rel (0) target = $region13
  $region12: #{_lambda_.1} parent=0 // pred_region
    _
  $region13: #{_lambda_.1} parent=0 // pred_fallthru
    _

</llo_original>
